<compile_context>
chip_gen: v5e
topology: v5e:2x2
jax: 0.10.0
libtpu: 0.0.40
codegen_flags: <defaults>
</compile_context>

<pallas_src>
import jax
import jax.numpy as jnp
import numpy as np
from jax.experimental import pallas as pl
from jax.experimental.pallas import tpu as pltpu


def _doubleconv_kernel(x_ref, m1_ref, b1_ref, s_ref, m2_ref, b2_ref, o_ref):
    # x_ref : (Mb, Kp1)       ky-stacked, zero-padded conv1 LHS rows (Mb=nb*H)
    # m1_ref: (Kp1, WC)       K-stacked banded conv1 weights (BN1 scale folded)
    # b1_ref: (1, WC)         conv1/BN1 bias, tiled over width
    # s_ref : (2*Mb, Mb)      [S_down; S_up] row-shift operator (per-image
    #                         boundary rows are all-zero -> height halo)
    # m2_ref: (3*WC, WC)      K-stacked banded conv2 weights (BN2 scale folded,
    #                         width zero-padding folded in)
    # b2_ref: (1, WC)
    # o_ref : (Mb, WC)        lane-dense output slab
    Mb = o_ref.shape[0]

    # ---- conv1 + BN1(scale): ONE lane-aligned MXU push (K padded to 256) ----
    y = jnp.dot(x_ref[...], m1_ref[...], preferred_element_type=jnp.float32)
    y = jnp.maximum(y + b1_ref[...], 0.0)                       # (Mb, WC)

    # ---- conv2 height halo: one tiny MXU push against the block-banded
    # shift operator (encodes both the +/-1 row shift and the zero rows at
    # each image's top/bottom).  No sublane-crossing concats, no relayouts.
    y2 = jnp.dot(s_ref[...], y, preferred_element_type=jnp.float32)  # (2Mb, WC)
    y_dn = y2[:Mb, :]       # row r sees y[r-1]  (zero at image top)
    y_up = y2[Mb:, :]       # row r sees y[r+1]  (zero at image bottom)

    # ---- conv2 + BN2(scale): ONE K-merged MXU push (K = 3*WC) ----
    lhs2 = jnp.concatenate([y_dn, y, y_up], axis=-1)            # (Mb, 3*WC)
    z = jnp.dot(lhs2, m2_ref[...], preferred_element_type=jnp.float32)
    z = jnp.maximum(z + b2_ref[...], 0.0)

    # Single lane-dense, full-width store.
    o_ref[...] = z.astype(o_ref.dtype)


def _band_conv1(w_hwio, W, Wp):
    """w_hwio: (3,3,Cin,Cout), BN scale folded. Returns (3, Wp*Cin, W*Cout).

    out_row[h] = sum_ky x_pad_row[h+ky, :] @ band[ky]  (x rows width-padded).
    """
    mats = []
    for ky in range(3):
        m = None
        for kx in range(3):
            shift = jnp.eye(Wp, W, k=-kx, dtype=w_hwio.dtype)   # q = w + kx
            blk = jnp.kron(shift, w_hwio[ky, kx])
            m = blk if m is None else m + blk
        mats.append(m)
    return jnp.stack(mats)


def _band_conv2(w_hwio, W):
    """w_hwio: (3,3,Cout,Cout), BN scale folded. Returns (3, W*Cout, W*Cout).

    Width zero-padding folded in by truncating the band to valid columns.
    """
    mats = []
    for ky in range(3):
        m = None
        for kx in range(3):
            shift = jnp.eye(W, W, k=1 - kx, dtype=w_hwio.dtype)  # p = w+kx-1
            blk = jnp.kron(shift, w_hwio[ky, kx])
            m = blk if m is None else m + blk
        mats.append(m)
    return jnp.stack(mats)


def doubleconv_pallas(x_nchw, w1_oihw, scale1, bias1, w2_oihw, scale2, bias2):
    """x_nchw: (N, Cin, H, W). Returns (N, Cout, H, W) (PyTorch layout)."""
    N, Cin, H, W = x_nchw.shape
    Cout = w1_oihw.shape[0]
    Hp, Wp = H + 2, W + 2
    WC = W * Cout
    K1 = 3 * Wp * Cin                         # merged conv1 contraction dim
    Kp1 = max(256, ((K1 + 127) // 128) * 128)  # zero-pad K -> aligned loads

    # Batch-block choice: fold as many images as possible into one block's M
    # (per-step pipeline overhead dominates tiny kernels), but keep >=2
    # "parallel" grid blocks when the problem is big enough to feed both
    # v7x TensorCores with >=~256 MXU rows each.
    target_rows = 256
    if N >= 2 and N * H >= 2 * target_rows:
        nb = min(N, max(1, target_rows // H))
    else:
        nb = N
    while N % nb:
        nb -= 1
    Mb = nb * H
    gn = N // nb

    # ---- lane-dense, ky-stacked conv1 LHS: rows=(n,h), K = 3*Wp*Cin -> Kp1 --
    x_nhwc = jnp.transpose(x_nchw, (0, 2, 3, 1))                # (N,H,W,Cin)
    x_pad = jnp.pad(x_nhwc, ((0, 0), (1, 1), (1, 1), (0, 0)))   # (N,Hp,Wp,Cin)
    x_slab = x_pad.reshape(N, Hp, Wp * Cin)
    x_sh = jnp.concatenate([x_slab[:, ky:ky + H, :] for ky in range(3)],
                           axis=-1)                             # (N,H,K1)
    x_in = jnp.pad(x_sh, ((0, 0), (0, 0), (0, Kp1 - K1))).reshape(N * H, Kp1)

    # ---- fold BN scale into weights; build K-stacked banded matrices ----
    w1_hwio = jnp.transpose(w1_oihw, (2, 3, 1, 0)) * scale1[None, None, None, :]
    w2_hwio = jnp.transpose(w2_oihw, (2, 3, 1, 0)) * scale2[None, None, None, :]
    m1 = _band_conv1(w1_hwio, W, Wp).reshape(K1, WC)            # vstack over ky
    m1 = jnp.pad(m1, ((0, Kp1 - K1), (0, 0)))                   # (Kp1, WC)
    m2 = _band_conv2(w2_hwio, W).reshape(3 * WC, WC)            # (3*WC, WC)
    b1 = jnp.tile(bias1, W).reshape(1, WC).astype(jnp.float32)
    b2 = jnp.tile(bias2, W).reshape(1, WC).astype(jnp.float32)

    # ---- block-banded +/-1 row-shift operator (per-image zero boundaries) --
    r = np.arange(Mb)
    s_dn = ((r[:, None] - 1 == r[None, :]) & (r[:, None] % H != 0))
    s_up = ((r[:, None] + 1 == r[None, :]) & (r[:, None] % H != H - 1))
    s_shift = jnp.asarray(
        np.concatenate([s_dn, s_up], axis=0).astype(np.float32))  # (2Mb, Mb)

    out_flat = pl.pallas_call(
        _doubleconv_kernel,
        out_shape=jax.ShapeDtypeStruct((N * H, WC), x_nchw.dtype),
        grid=(gn,),
        in_specs=[
            pl.BlockSpec((Mb, Kp1), lambda b: (b, 0)),
            # Constants: block (0,0) every step; at this size the grid has a
            # single step so they are fetched once (Buffered(1) unnecessary).
            pl.BlockSpec((Kp1, WC), lambda b: (0, 0)),
            pl.BlockSpec((1, WC), lambda b: (0, 0)),
            pl.BlockSpec((2 * Mb, Mb), lambda b: (0, 0)),
            pl.BlockSpec((3 * WC, WC), lambda b: (0, 0)),
            pl.BlockSpec((1, WC), lambda b: (0, 0)),
        ],
        out_specs=pl.BlockSpec((Mb, WC), lambda b: (b, 0)),
        compiler_params=pltpu.CompilerParams(
            dimension_semantics=("parallel",)),
    )(x_in, m1, b1, s_shift, m2, b2)

    # (N*H, W*Cout) -> (N, H, W, Cout) -> NCHW
    return jnp.transpose(out_flat.reshape(N, H, W, Cout), (0, 3, 1, 2))


def _reference(x, w1, s1, b1, w2, s2, b2):
    """Pure-JAX reference (NCHW, OIHW) for validation."""
    dn = ('NCHW', 'OIHW', 'NCHW')
    y = jax.lax.conv_general_dilated(x, w1, (1, 1), 'SAME', dimension_numbers=dn)
    y = jnp.maximum(y * s1[None, :, None, None] + b1[None, :, None, None], 0.0)
    z = jax.lax.conv_general_dilated(y, w2, (1, 1), 'SAME', dimension_numbers=dn)
    return jnp.maximum(z * s2[None, :, None, None] + b2[None, :, None, None], 0.0)


if __name__ == "__main__":
    key = jax.random.PRNGKey(0)
    N, Cin, Cout, H, W = 2, 4, 8, 16, 16
    eps = 1e-5

    keys = jax.random.split(key, 11)
    x = jax.random.normal(keys[0], (N, Cin, H, W), jnp.float32)

    # Conv weights (PyTorch OIHW layout), no bias.
    w1 = jax.random.normal(keys[1], (Cout, Cin, 3, 3), jnp.float32) * 0.1
    w2 = jax.random.normal(keys[2], (Cout, Cout, 3, 3), jnp.float32) * 0.1

    # BatchNorm parameters (inference-mode / running stats), deterministic.
    gamma1 = 1.0 + 0.1 * jax.random.normal(keys[3], (Cout,), jnp.float32)
    beta1 = 0.1 * jax.random.normal(keys[4], (Cout,), jnp.float32)
    mean1 = 0.1 * jax.random.normal(keys[5], (Cout,), jnp.float32)
    var1 = jnp.abs(1.0 + 0.1 * jax.random.normal(keys[6], (Cout,), jnp.float32))
    gamma2 = 1.0 + 0.1 * jax.random.normal(keys[7], (Cout,), jnp.float32)
    beta2 = 0.1 * jax.random.normal(keys[8], (Cout,), jnp.float32)
    mean2 = 0.1 * jax.random.normal(keys[9], (Cout,), jnp.float32)
    var2 = jnp.abs(1.0 + 0.1 * jax.random.normal(keys[10], (Cout,), jnp.float32))

    # Fold BN into per-channel scale/bias: y = x*scale + bias
    scale1 = gamma1 / jnp.sqrt(var1 + eps)
    bias1 = beta1 - mean1 * scale1
    scale2 = gamma2 / jnp.sqrt(var2 + eps)
    bias2 = beta2 - mean2 * scale2

    out = doubleconv_pallas(x, w1, scale1, bias1, w2, scale2, bias2)
    out = jax.block_until_ready(out)

    ref = _reference(x, w1, scale1, bias1, w2, scale2, bias2)
    np.testing.assert_allclose(np.asarray(out), np.asarray(ref),
                               rtol=1e-4, atol=1e-4)
    print("KERNEL_OK")
</pallas_src>

<mosaic_0001>
module attributes {stable_mosaic.version = 11 : i64} {
  func.func @_doubleconv_kernel(%arg0: i32, %arg1: memref<32x256xf32, #tpu.memory_space<vmem>>, %arg2: memref<256x128xf32, #tpu.memory_space<vmem>>, %arg3: memref<1x128xf32, #tpu.memory_space<vmem>>, %arg4: memref<64x32xf32, #tpu.memory_space<vmem>>, %arg5: memref<384x128xf32, #tpu.memory_space<vmem>>, %arg6: memref<1x128xf32, #tpu.memory_space<vmem>>, %arg7: memref<32x128xf32, #tpu.memory_space<vmem>>) attributes {dimension_semantics = [#tpu.dimension_semantics<parallel>], iteration_bounds = array<i64: 1>, scalar_prefetch = 0 : i64, scratch_operands = 0 : i64, tpu.core_type = #tpu.core_type<tc>, window_params = [{transform_indices = @transform_0, window_bounds = array<i64: 32, 256>}, {pipeline_mode = #tpu.pipeline_mode<synchronous>, transform_indices = @transform_1, window_bounds = array<i64: 256, 128>}, {pipeline_mode = #tpu.pipeline_mode<synchronous>, transform_indices = @transform_2, window_bounds = array<i64: 1, 128>}, {pipeline_mode = #tpu.pipeline_mode<synchronous>, transform_indices = @transform_3, window_bounds = array<i64: 64, 32>}, {pipeline_mode = #tpu.pipeline_mode<synchronous>, transform_indices = @transform_4, window_bounds = array<i64: 384, 128>}, {pipeline_mode = #tpu.pipeline_mode<synchronous>, transform_indices = @transform_5, window_bounds = array<i64: 1, 128>}, {transform_indices = @transform_6, window_bounds = array<i64: 32, 128>}]} {
    %c0 = arith.constant 0 : index
    %c0_0 = arith.constant 0 : index
    %0 = vector.load %arg1[%c0, %c0_0] : memref<32x256xf32, #tpu.memory_space<vmem>>, vector<32x256xf32>
    %c0_1 = arith.constant 0 : index
    %c0_2 = arith.constant 0 : index
    %1 = vector.load %arg2[%c0_1, %c0_2] : memref<256x128xf32, #tpu.memory_space<vmem>>, vector<256x128xf32>
    %cst = arith.constant dense<0.000000e+00> : vector<32x128xf32>
    %2 = tpu.matmul %0, %1, %cst {dimension_numbers = #tpu.dot_dimension_numbers<[1], [0], [0], [1], [0, 0, 1, 1], [], []>} : vector<32x256xf32>, vector<256x128xf32>, vector<32x128xf32> -> vector<32x128xf32>
    %c0_3 = arith.constant 0 : index
    %c0_4 = arith.constant 0 : index
    %3 = vector.load %arg3[%c0_3, %c0_4] : memref<1x128xf32, #tpu.memory_space<vmem>>, vector<1x128xf32>
    %4 = vector.broadcast %3 : vector<1x128xf32> to vector<32x128xf32>
    %5 = arith.addf %2, %4 : vector<32x128xf32>
    %cst_5 = arith.constant 0.000000e+00 : f32
    %6 = vector.broadcast %cst_5 : f32 to vector<32x128xf32>
    %7 = arith.maximumf %5, %6 : vector<32x128xf32>
    %c0_6 = arith.constant 0 : index
    %c0_7 = arith.constant 0 : index
    %8 = vector.load %arg4[%c0_6, %c0_7] : memref<64x32xf32, #tpu.memory_space<vmem>>, vector<64x32xf32>
    %cst_8 = arith.constant dense<0.000000e+00> : vector<64x128xf32>
    %9 = tpu.matmul %8, %7, %cst_8 {dimension_numbers = #tpu.dot_dimension_numbers<[1], [0], [0], [1], [0, 0, 1, 1], [], []>} : vector<64x32xf32>, vector<32x128xf32>, vector<64x128xf32> -> vector<64x128xf32>
    %10 = vector.extract_strided_slice %9 {offsets = [0, 0], sizes = [32, 128], strides = [1, 1]} : vector<64x128xf32> to vector<32x128xf32>
    %11 = vector.extract_strided_slice %9 {offsets = [32, 0], sizes = [32, 128], strides = [1, 1]} : vector<64x128xf32> to vector<32x128xf32>
    %12 = tpu.concatenate %10, %7, %11 in 1 : vector<32x128xf32>, vector<32x128xf32>, vector<32x128xf32> -> vector<32x384xf32>
    %c0_9 = arith.constant 0 : index
    %c0_10 = arith.constant 0 : index
    %13 = vector.load %arg5[%c0_9, %c0_10] : memref<384x128xf32, #tpu.memory_space<vmem>>, vector<384x128xf32>
    %cst_11 = arith.constant dense<0.000000e+00> : vector<32x128xf32>
    %14 = tpu.matmul %12, %13, %cst_11 {dimension_numbers = #tpu.dot_dimension_numbers<[1], [0], [0], [1], [0, 0, 1, 1], [], []>} : vector<32x384xf32>, vector<384x128xf32>, vector<32x128xf32> -> vector<32x128xf32>
    %c0_12 = arith.constant 0 : index
    %c0_13 = arith.constant 0 : index
    %15 = vector.load %arg6[%c0_12, %c0_13] : memref<1x128xf32, #tpu.memory_space<vmem>>, vector<1x128xf32>
    %16 = vector.broadcast %15 : vector<1x128xf32> to vector<32x128xf32>
    %17 = arith.addf %14, %16 : vector<32x128xf32>
    %cst_14 = arith.constant 0.000000e+00 : f32
    %18 = vector.broadcast %cst_14 : f32 to vector<32x128xf32>
    %19 = arith.maximumf %17, %18 : vector<32x128xf32>
    %c0_15 = arith.constant 0 : index
    %c0_16 = arith.constant 0 : index
    %20 = vector.load %arg7[%c0_15, %c0_16] : memref<32x128xf32, #tpu.memory_space<vmem>>, vector<32x128xf32>
    tpu.vector_store %arg7[%c0_15, %c0_16], %19 {strides = array<i32>} : memref<32x128xf32, #tpu.memory_space<vmem>>, vector<32x128xf32>,
    return
  }
  func.func @transform_0(%arg0: i32) -> (i32, i32) {
    %c0_i32 = arith.constant 0 : i32
    %c0_i32_0 = arith.constant 0 : i32
    return %arg0, %c0_i32 : i32, i32
  }
  func.func @transform_1(%arg0: i32) -> (i32, i32) {
    %c0_i32 = arith.constant 0 : i32
    %c0_i32_0 = arith.constant 0 : i32
    %c0_i32_1 = arith.constant 0 : i32
    return %c0_i32, %c0_i32_0 : i32, i32
  }
  func.func @transform_2(%arg0: i32) -> (i32, i32) {
    %c0_i32 = arith.constant 0 : i32
    %c0_i32_0 = arith.constant 0 : i32
    %c0_i32_1 = arith.constant 0 : i32
    return %c0_i32, %c0_i32_0 : i32, i32
  }
  func.func @transform_3(%arg0: i32) -> (i32, i32) {
    %c0_i32 = arith.constant 0 : i32
    %c0_i32_0 = arith.constant 0 : i32
    %c0_i32_1 = arith.constant 0 : i32
    return %c0_i32, %c0_i32_0 : i32, i32
  }
  func.func @transform_4(%arg0: i32) -> (i32, i32) {
    %c0_i32 = arith.constant 0 : i32
    %c0_i32_0 = arith.constant 0 : i32
    %c0_i32_1 = arith.constant 0 : i32
    return %c0_i32, %c0_i32_0 : i32, i32
  }
  func.func @transform_5(%arg0: i32) -> (i32, i32) {
    %c0_i32 = arith.constant 0 : i32
    %c0_i32_0 = arith.constant 0 : i32
    %c0_i32_1 = arith.constant 0 : i32
    return %c0_i32, %c0_i32_0 : i32, i32
  }
  func.func @transform_6(%arg0: i32) -> (i32, i32) {
    %c0_i32 = arith.constant 0 : i32
    %c0_i32_0 = arith.constant 0 : i32
    return %arg0, %c0_i32 : i32, i32
  }
}

</mosaic_0001>

<llo_original>
// kernel: tpu_custom_call.1
$region0: #{tpu_custom_call.1}
  #allocation0 [shape = 'u32[]', space=smem, size = 0x4, offset = 0x4, fixed_abs, tag = 'smem constant byte address 0x4 - core index']
  #allocation1 [shape = 'u32[72,128]{1,0:T(1,128)}', space=vmem, size = 0x9000, scoped, tag = 'internal scratch']
  %s0 = inlined_call_operand.vmem [shape: f32[32,256], index: 0, kind: input, shape index: {}]
  %s1 = inlined_call_operand.hbm [shape: f32[256,128], index: 1, kind: input, shape index: {}]
  %s2 = inlined_call_operand.vmem [shape: f32[1,128], index: 2, kind: input, shape index: {}]
  %s3 = inlined_call_operand.vmem [shape: f32[64,32], index: 3, kind: input, shape index: {}]
  %s4 = inlined_call_operand.hbm [shape: f32[384,128], index: 4, kind: input, shape index: {}]
  %s5 = inlined_call_operand.vmem [shape: f32[1,128], index: 5, kind: input, shape index: {}]
  %s6 = inlined_call_operand.hbm [shape: f32[32,128], index: 6, kind: output, shape index: {}]
  %s7 = sld [smem:[#allocation0]]
  $region42: #{tpu_custom_call.1} parent=0
    _
  %s9 = ssub.s32 1, %s7
  %s10 = scalar_select 0, %s9, %s7
  $region1: #{tpu_custom_call.1} parent=0
    #allocation2 [shape = 'u8[131072]{0}', space=vmem, size = 0x20000, scoped, tag = 'input window, operand 1, single buffered']
    #allocation3 [shape = 's32[1]{0}', space=sflag, size = 0x4, scoped, tag = 'scoped memory for tpu_custom_call.1']
    #allocation4 [shape = 's32[1]{0}', space=sflag, size = 0x4, scoped, tag = 'scoped memory for tpu_custom_call.1']
    #allocation5 [shape = 'u8[196608]{0}', space=vmem, size = 0x30000, scoped, tag = 'input window, operand 4, single buffered']
    #allocation6 [shape = 's32[1]{0}', space=sflag, size = 0x4, scoped, tag = 'scoped memory for tpu_custom_call.1']
    #allocation7 [shape = 'u8[16384]{0}', space=vmem, size = 0x4000, scoped, tag = 'output window, operand 0, single buffered']
    %11 = vsyncpa [#allocation3], 0
    %12 = vsyncpa [#allocation6], 0
    %13 = vsyncpa [#allocation4], 0
    // Predicated region
    $region2: #{tpu_custom_call.1} parent=1 // pred_check
      _
    $region3: #{tpu_custom_call.1} parent=1 // pred_check_branch
      %15 = sbr.rel (0) target = $region5
    $region4: #{tpu_custom_call.1} parent=1 // pred_region
      _
    $region5: #{tpu_custom_call.1} parent=1 // pred_fallthru
      _
    // Predicated region
    $region6: #{tpu_custom_call.1} parent=1 // pred_check
      _
    $region7: #{tpu_custom_call.1} parent=1 // pred_check_branch
      %17 = sbr.rel (0) target = $region9
    $region8: #{tpu_custom_call.1} parent=1 // pred_region
      %19 = vsyncadd [#allocation3], 0
      %s20 = sshll.u32 %s1, 4
      %s21 = int_to_ptr.hbm [resolvable:$true] %s20
      %s22 = sshll.u32 [#allocation2], 4
      %s23 = int_to_ptr.vmem [resolvable:$true] %s22
      %28 = dma.hbm_to_vmem [thread:$0]  %s21, 4096, %s23, [#allocation3], 128, 128, 8
    $region9: #{tpu_custom_call.1} parent=1 // pred_fallthru
      _
    // Predicated region
    $region10: #{tpu_custom_call.1} parent=1 // pred_check
      _
    $region11: #{tpu_custom_call.1} parent=1 // pred_check_branch
      %30 = sbr.rel (0) target = $region13
    $region12: #{tpu_custom_call.1} parent=1 // pred_region
      _
    $region13: #{tpu_custom_call.1} parent=1 // pred_fallthru
      _
    // Predicated region
    $region14: #{tpu_custom_call.1} parent=1 // pred_check
      _
    $region15: #{tpu_custom_call.1} parent=1 // pred_check_branch
      %32 = sbr.rel (0) target = $region17
    $region16: #{tpu_custom_call.1} parent=1 // pred_region
      _
    $region17: #{tpu_custom_call.1} parent=1 // pred_fallthru
      _
    // Predicated region
    $region18: #{tpu_custom_call.1} parent=1 // pred_check
      _
    $region19: #{tpu_custom_call.1} parent=1 // pred_check_branch
      %34 = sbr.rel (0) target = $region21
    $region20: #{tpu_custom_call.1} parent=1 // pred_region
      %36 = vsyncadd [#allocation6], 0
      %s37 = sshll.u32 %s4, 4
      %s38 = int_to_ptr.hbm [resolvable:$true] %s37
      %s39 = sshll.u32 [#allocation5], 4
      %s40 = int_to_ptr.vmem [resolvable:$true] %s39
      %45 = dma.hbm_to_vmem [thread:$0]  %s38, 6144, %s40, [#allocation6], 128, 128, 8
    $region21: #{tpu_custom_call.1} parent=1 // pred_fallthru
      _
    // Predicated region
    $region22: #{tpu_custom_call.1} parent=1 // pred_check
      _
    $region23: #{tpu_custom_call.1} parent=1 // pred_check_branch
      %47 = sbr.rel (0) target = $region25
    $region24: #{tpu_custom_call.1} parent=1 // pred_region
      _
    $region25: #{tpu_custom_call.1} parent=1 // pred_fallthru
      _
    // Predicated region
    $region26: #{tpu_custom_call.1} parent=1 // pred_check
      _
    $region27: #{tpu_custom_call.1} parent=1 // pred_check_branch
      %49 = sbr.rel (0) target = $region29
    $region28: #{tpu_custom_call.1} parent=1 // pred_region
      %51 = dma.done [#allocation3], 4096
    $region29: #{tpu_custom_call.1} parent=1 // pred_fallthru
      _
    // Predicated region
    $region30: #{tpu_custom_call.1} parent=1 // pred_check
      _
    $region31: #{tpu_custom_call.1} parent=1 // pred_check_branch
      %53 = sbr.rel (0) target = $region33
    $region32: #{tpu_custom_call.1} parent=1 // pred_region
      %55 = dma.done [#allocation6], 6144
    $region33: #{tpu_custom_call.1} parent=1 // pred_fallthru
      _
    %v56 = vld [vmem:[%s0] sm:$0xff]
    %v57 = vld [vmem:[%s0 + $0x8] sm:$0xff]
    %v58 = vld [vmem:[%s0 + $0x10] sm:$0xff]
    %v59 = vld [vmem:[%s0 + $0x18] sm:$0xff]
    %v60 = vld [vmem:[%s0 + $0x20] sm:$0xff]
    %v61 = vld [vmem:[%s0 + $0x28] sm:$0xff]
    %v62 = vld [vmem:[%s0 + $0x30] sm:$0xff]
    %v63 = vld [vmem:[%s0 + $0x38] sm:$0xff]
    %v64 = vld [vmem:[#allocation2] sm:$0xff]
    %v65 = vld [vmem:[#allocation2 + $0x8] sm:$0xff]
    %v66 = vld [vmem:[#allocation2 + $0x10] sm:$0xff]
    %v67 = vld [vmem:[#allocation2 + $0x18] sm:$0xff]
    %v68 = vld [vmem:[#allocation2 + $0x20] sm:$0xff]
    %v69 = vld [vmem:[#allocation2 + $0x28] sm:$0xff]
    %v70 = vld [vmem:[#allocation2 + $0x30] sm:$0xff]
    %v71 = vld [vmem:[#allocation2 + $0x38] sm:$0xff]
    %v72 = vld [vmem:[#allocation2 + $0x40] sm:$0xff]
    %v73 = vld [vmem:[#allocation2 + $0x48] sm:$0xff]
    %v74 = vld [vmem:[#allocation2 + $0x50] sm:$0xff]
    %v75 = vld [vmem:[#allocation2 + $0x58] sm:$0xff]
    %v76 = vld [vmem:[#allocation2 + $0x60] sm:$0xff]
    %v77 = vld [vmem:[#allocation2 + $0x68] sm:$0xff]
    %v78 = vld [vmem:[#allocation2 + $0x70] sm:$0xff]
    %v79 = vld [vmem:[#allocation2 + $0x78] sm:$0xff]
    %v80 = vld [vmem:[#allocation2 + $0x80] sm:$0xff]
    %v81 = vld [vmem:[#allocation2 + $0x88] sm:$0xff]
    %v82 = vld [vmem:[#allocation2 + $0x90] sm:$0xff]
    %v83 = vld [vmem:[#allocation2 + $0x98] sm:$0xff]
    %v84 = vld [vmem:[#allocation2 + $0xa0] sm:$0xff]
    %v85 = vld [vmem:[#allocation2 + $0xa8] sm:$0xff]
    %v86 = vld [vmem:[#allocation2 + $0xb0] sm:$0xff]
    %v87 = vld [vmem:[#allocation2 + $0xb8] sm:$0xff]
    %v88 = vld [vmem:[#allocation2 + $0xc0] sm:$0xff]
    %v89 = vld [vmem:[#allocation2 + $0xc8] sm:$0xff]
    %v90 = vld [vmem:[#allocation2 + $0xd0] sm:$0xff]
    %v91 = vld [vmem:[#allocation2 + $0xd8] sm:$0xff]
    %v92 = vld [vmem:[#allocation2 + $0xe0] sm:$0xff]
    %v93 = vld [vmem:[#allocation2 + $0xe8] sm:$0xff]
    %v94 = vld [vmem:[#allocation2 + $0xf0] sm:$0xff]
    %v95 = vld [vmem:[#allocation2 + $0xf8] sm:$0xff]
    %v96 = vld [vmem:[%s2] sm:$0x1]
    %v98 = vperm.slane %v96, 0
    %100 = vmatpush.msra.mxu0 %v79
    %101 = vmatpush.msra.mxu0 %v78
    %102 = vmatpush.msra.mxu0 %v77
    %103 = vmatpush.msra.mxu0 %v76
    %104 = vmatpush.msra.mxu0 %v75
    %105 = vmatpush.msra.mxu0 %v74
    %106 = vmatpush.msra.mxu0 %v73
    %107 = vmatpush.msra.mxu0 %v72
    %108 = vmatpush.msra.mxu0 %v71
    %109 = vmatpush.msra.mxu0 %v70
    %110 = vmatpush.msra.mxu0 %v69
    %111 = vmatpush.msra.mxu0 %v68
    %112 = vmatpush.msra.mxu0 %v67
    %113 = vmatpush.msra.mxu0 %v66
    %114 = vmatpush.msra.mxu0 %v65
    %115 = vmatpush.msra.mxu0 %v64
    %116 = vmatmul.f32.gmra.mxu0 %v56
    %v117 = vpop.f32.mrf.mxu0
    %v118 = vadd.f32 %v98, %v117
    %119 = vmatmul.f32.gmra.mxu0 %v58
    %v120 = vpop.f32.mrf.mxu0
    %v121 = vadd.f32 %v98, %v120
    %122 = vmatmul.f32.gmra.mxu0 %v60
    %v123 = vpop.f32.mrf.mxu0
    %v124 = vadd.f32 %v98, %v123
    %125 = vmatmul.f32.gmra.mxu0 %v62
    %v126 = vpop.f32.mrf.mxu0
    %v127 = vadd.f32 %v98, %v126
    %128 = vdwg.mxu0
    %129 = vmatpush.msra.mxu0 %v95
    %130 = vmatpush.msra.mxu0 %v94
    %131 = vmatpush.msra.mxu0 %v93
    %132 = vmatpush.msra.mxu0 %v92
    %133 = vmatpush.msra.mxu0 %v91
    %134 = vmatpush.msra.mxu0 %v90
    %135 = vmatpush.msra.mxu0 %v89
    %136 = vmatpush.msra.mxu0 %v88
    %137 = vmatpush.msra.mxu0 %v87
    %138 = vmatpush.msra.mxu0 %v86
    %139 = vmatpush.msra.mxu0 %v85
    %140 = vmatpush.msra.mxu0 %v84
    %141 = vmatpush.msra.mxu0 %v83
    %142 = vmatpush.msra.mxu0 %v82
    %143 = vmatpush.msra.mxu0 %v81
    %144 = vmatpush.msra.mxu0 %v80
    %145 = vmatmul.f32.gmra.mxu0 %v57
    %v146 = vpop.f32.mrf.mxu0
    %v147 = vadd.f32 %v118, %v146
    %148 = vmatmul.f32.gmra.mxu0 %v59
    %v149 = vpop.f32.mrf.mxu0
    %v150 = vadd.f32 %v121, %v149
    %151 = vmatmul.f32.gmra.mxu0 %v61
    %v152 = vpop.f32.mrf.mxu0
    %v153 = vadd.f32 %v124, %v152
    %154 = vmatmul.f32.gmra.mxu0 %v63
    %v155 = vpop.f32.mrf.mxu0
    %v156 = vadd.f32 %v127, %v155
    %157 = vdwg.mxu0
    %v158 = vmax.f32 %v147, 0.0
    %v159 = vmax.f32 %v150, 0.0
    %v160 = vmax.f32 %v153, 0.0
    %v161 = vmax.f32 %v156, 0.0
    %v162 = vld [vmem:[%s3] sm:$0xff]
    %v163 = vld [vmem:[%s3 + $0x8] sm:$0xff]
    %v164 = vld [vmem:[%s3 + $0x10] sm:$0xff]
    %v165 = vld [vmem:[%s3 + $0x18] sm:$0xff]
    %v166 = vld [vmem:[%s3 + $0x20] sm:$0xff]
    %v167 = vld [vmem:[%s3 + $0x28] sm:$0xff]
    %v168 = vld [vmem:[%s3 + $0x30] sm:$0xff]
    %v169 = vld [vmem:[%s3 + $0x38] sm:$0xff]
    %vm170 = vcmask 261120
    %v172 = vsel %vm170, %v162, 0
    %v175 = vsel %vm170, %v163, 0
    %v178 = vsel %vm170, %v164, 0
    %v181 = vsel %vm170, %v165, 0
    %v184 = vsel %vm170, %v166, 0
    %v187 = vsel %vm170, %v167, 0
    %v190 = vsel %vm170, %v168, 0
    %v193 = vsel %vm170, %v169, 0
    %195 = vmatpush.msra.mxu0 0.0
    %196 = vmatpush.msra.mxu0 0.0
    %197 = vmatpush.msra.mxu0 0.0
    %198 = vmatpush.msra.mxu0 0.0
    %199 = vmatpush.msra.mxu0 0.0
    %200 = vmatpush.msra.mxu0 0.0
    %201 = vmatpush.msra.mxu0 0.0
    %202 = vmatpush.msra.mxu0 0.0
    %203 = vmatpush.msra.mxu0 0.0
    %204 = vmatpush.msra.mxu0 0.0
    %205 = vmatpush.msra.mxu0 0.0
    %206 = vmatpush.msra.mxu0 0.0
    %207 = vmatpush.msra.mxu0 %v161
    %208 = vmatpush.msra.mxu0 %v160
    %209 = vmatpush.msra.mxu0 %v159
    %210 = vmatpush.msra.mxu0 %v158
    %211 = vmatmul.f32.gmra.mxu0 %v172
    %v212 = vpop.f32.mrf.mxu0
    %v213 = vadd.f32 0.0, %v212
    %214 = vmatmul.f32.gmra.mxu0 %v175
    %v215 = vpop.f32.mrf.mxu0
    %v216 = vadd.f32 0.0, %v215
    %217 = vmatmul.f32.gmra.mxu0 %v178
    %v218 = vpop.f32.mrf.mxu0
    %v219 = vadd.f32 0.0, %v218
    %220 = vmatmul.f32.gmra.mxu0 %v181
    %v221 = vpop.f32.mrf.mxu0
    %v222 = vadd.f32 0.0, %v221
    %223 = vmatmul.f32.gmra.mxu0 %v184
    %v224 = vpop.f32.mrf.mxu0
    %v225 = vadd.f32 0.0, %v224
    %226 = vmatmul.f32.gmra.mxu0 %v187
    %v227 = vpop.f32.mrf.mxu0
    %v228 = vadd.f32 0.0, %v227
    %229 = vmatmul.f32.gmra.mxu0 %v190
    %v230 = vpop.f32.mrf.mxu0
    %v231 = vadd.f32 0.0, %v230
    %232 = vmatmul.f32.gmra.mxu0 %v193
    %v233 = vpop.f32.mrf.mxu0
    %v234 = vadd.f32 0.0, %v233
    %235 = vdwg.mxu0
    %v236 = vld [vmem:[#allocation5] sm:$0xff]
    %v237 = vld [vmem:[#allocation5 + $0x8] sm:$0xff]
    %v238 = vld [vmem:[#allocation5 + $0x10] sm:$0xff]
    %v239 = vld [vmem:[#allocation5 + $0x18] sm:$0xff]
    %v240 = vld [vmem:[#allocation5 + $0x20] sm:$0xff]
    %v241 = vld [vmem:[#allocation5 + $0x28] sm:$0xff]
    %v242 = vld [vmem:[#allocation5 + $0x30] sm:$0xff]
    %v243 = vld [vmem:[#allocation5 + $0x38] sm:$0xff]
    %v244 = vld [vmem:[#allocation5 + $0x40] sm:$0xff]
    %v245 = vld [vmem:[#allocation5 + $0x48] sm:$0xff]
    %v246 = vld [vmem:[#allocation5 + $0x50] sm:$0xff]
    %v247 = vld [vmem:[#allocation5 + $0x58] sm:$0xff]
    %v248 = vld [vmem:[#allocation5 + $0x60] sm:$0xff]
    %v249 = vld [vmem:[#allocation5 + $0x68] sm:$0xff]
    %v250 = vld [vmem:[#allocation5 + $0x70] sm:$0xff]
    %v251 = vld [vmem:[#allocation5 + $0x78] sm:$0xff]
    %v252 = vld [vmem:[#allocation5 + $0x80] sm:$0xff]
    %v253 = vld [vmem:[#allocation5 + $0x88] sm:$0xff]
    %v254 = vld [vmem:[#allocation5 + $0x90] sm:$0xff]
    %v255 = vld [vmem:[#allocation5 + $0x98] sm:$0xff]
    %v256 = vld [vmem:[#allocation5 + $0xa0] sm:$0xff]
    %v257 = vld [vmem:[#allocation5 + $0xa8] sm:$0xff]
    %v258 = vld [vmem:[#allocation5 + $0xb0] sm:$0xff]
    %v259 = vld [vmem:[#allocation5 + $0xb8] sm:$0xff]
    %v260 = vld [vmem:[#allocation5 + $0xc0] sm:$0xff]
    %v261 = vld [vmem:[#allocation5 + $0xc8] sm:$0xff]
    %v262 = vld [vmem:[#allocation5 + $0xd0] sm:$0xff]
    %v263 = vld [vmem:[#allocation5 + $0xd8] sm:$0xff]
    %v264 = vld [vmem:[#allocation5 + $0xe0] sm:$0xff]
    %v265 = vld [vmem:[#allocation5 + $0xe8] sm:$0xff]
    %v266 = vld [vmem:[#allocation5 + $0xf0] sm:$0xff]
    %v267 = vld [vmem:[#allocation5 + $0xf8] sm:$0xff]
    %v268 = vld [vmem:[#allocation5 + $0x100] sm:$0xff]
    %v269 = vld [vmem:[#allocation5 + $0x108] sm:$0xff]
    %v270 = vld [vmem:[#allocation5 + $0x110] sm:$0xff]
    %v271 = vld [vmem:[#allocation5 + $0x118] sm:$0xff]
    %v272 = vld [vmem:[#allocation5 + $0x120] sm:$0xff]
    %v273 = vld [vmem:[#allocation5 + $0x128] sm:$0xff]
    %v274 = vld [vmem:[#allocation5 + $0x130] sm:$0xff]
    %v275 = vld [vmem:[#allocation5 + $0x138] sm:$0xff]
    %v276 = vld [vmem:[#allocation5 + $0x140] sm:$0xff]
    %v277 = vld [vmem:[#allocation5 + $0x148] sm:$0xff]
    %v278 = vld [vmem:[#allocation5 + $0x150] sm:$0xff]
    %v279 = vld [vmem:[#allocation5 + $0x158] sm:$0xff]
    %v280 = vld [vmem:[#allocation5 + $0x160] sm:$0xff]
    %v281 = vld [vmem:[#allocation5 + $0x168] sm:$0xff]
    %v282 = vld [vmem:[#allocation5 + $0x170] sm:$0xff]
    %v283 = vld [vmem:[#allocation5 + $0x178] sm:$0xff]
    %v284 = vld [vmem:[%s5] sm:$0x1]
    %v286 = vperm.slane %v284, 0
    %288 = vmatpush.msra.mxu0 %v251
    %289 = vmatpush.msra.mxu0 %v250
    %290 = vmatpush.msra.mxu0 %v249
    %291 = vmatpush.msra.mxu0 %v248
    %292 = vmatpush.msra.mxu0 %v247
    %293 = vmatpush.msra.mxu0 %v246
    %294 = vmatpush.msra.mxu0 %v245
    %295 = vmatpush.msra.mxu0 %v244
    %296 = vmatpush.msra.mxu0 %v243
    %297 = vmatpush.msra.mxu0 %v242
    %298 = vmatpush.msra.mxu0 %v241
    %299 = vmatpush.msra.mxu0 %v240
    %300 = vmatpush.msra.mxu0 %v239
    %301 = vmatpush.msra.mxu0 %v238
    %302 = vmatpush.msra.mxu0 %v237
    %303 = vmatpush.msra.mxu0 %v236
    %304 = vmatmul.f32.gmra.mxu0 %v213
    %v305 = vpop.f32.mrf.mxu0
    %v306 = vadd.f32 %v286, %v305
    %307 = vmatmul.f32.gmra.mxu0 %v216
    %v308 = vpop.f32.mrf.mxu0
    %v309 = vadd.f32 %v286, %v308
    %310 = vmatmul.f32.gmra.mxu0 %v219
    %v311 = vpop.f32.mrf.mxu0
    %v312 = vadd.f32 %v286, %v311
    %313 = vmatmul.f32.gmra.mxu0 %v222
    %v314 = vpop.f32.mrf.mxu0
    %v315 = vadd.f32 %v286, %v314
    %316 = vdwg.mxu0
    %317 = vmatpush.msra.mxu0 %v267
    %318 = vmatpush.msra.mxu0 %v266
    %319 = vmatpush.msra.mxu0 %v265
    %320 = vmatpush.msra.mxu0 %v264
    %321 = vmatpush.msra.mxu0 %v263
    %322 = vmatpush.msra.mxu0 %v262
    %323 = vmatpush.msra.mxu0 %v261
    %324 = vmatpush.msra.mxu0 %v260
    %325 = vmatpush.msra.mxu0 %v259
    %326 = vmatpush.msra.mxu0 %v258
    %327 = vmatpush.msra.mxu0 %v257
    %328 = vmatpush.msra.mxu0 %v256
    %329 = vmatpush.msra.mxu0 %v255
    %330 = vmatpush.msra.mxu0 %v254
    %331 = vmatpush.msra.mxu0 %v253
    %332 = vmatpush.msra.mxu0 %v252
    %333 = vmatmul.f32.gmra.mxu0 %v158
    %v334 = vpop.f32.mrf.mxu0
    %v335 = vadd.f32 %v306, %v334
    %336 = vmatmul.f32.gmra.mxu0 %v159
    %v337 = vpop.f32.mrf.mxu0
    %v338 = vadd.f32 %v309, %v337
    %339 = vmatmul.f32.gmra.mxu0 %v160
    %v340 = vpop.f32.mrf.mxu0
    %v341 = vadd.f32 %v312, %v340
    %342 = vmatmul.f32.gmra.mxu0 %v161
    %v343 = vpop.f32.mrf.mxu0
    %v344 = vadd.f32 %v315, %v343
    %345 = vdwg.mxu0
    %346 = vmatpush.msra.mxu0 %v283
    %347 = vmatpush.msra.mxu0 %v282
    %348 = vmatpush.msra.mxu0 %v281
    %349 = vmatpush.msra.mxu0 %v280
    %350 = vmatpush.msra.mxu0 %v279
    %351 = vmatpush.msra.mxu0 %v278
    %352 = vmatpush.msra.mxu0 %v277
    %353 = vmatpush.msra.mxu0 %v276
    %354 = vmatpush.msra.mxu0 %v275
    %355 = vmatpush.msra.mxu0 %v274
    %356 = vmatpush.msra.mxu0 %v273
    %357 = vmatpush.msra.mxu0 %v272
    %358 = vmatpush.msra.mxu0 %v271
    %359 = vmatpush.msra.mxu0 %v270
    %360 = vmatpush.msra.mxu0 %v269
    %361 = vmatpush.msra.mxu0 %v268
    %362 = vmatmul.f32.gmra.mxu0 %v225
    %v363 = vpop.f32.mrf.mxu0
    %v364 = vadd.f32 %v335, %v363
    %365 = vmatmul.f32.gmra.mxu0 %v228
    %v366 = vpop.f32.mrf.mxu0
    %v367 = vadd.f32 %v338, %v366
    %368 = vmatmul.f32.gmra.mxu0 %v231
    %v369 = vpop.f32.mrf.mxu0
    %v370 = vadd.f32 %v341, %v369
    %371 = vmatmul.f32.gmra.mxu0 %v234
    %v372 = vpop.f32.mrf.mxu0
    %v373 = vadd.f32 %v344, %v372
    %374 = vdwg.mxu0
    %v375 = vmax.f32 %v364, 0.0
    %v376 = vmax.f32 %v367, 0.0
    %v377 = vmax.f32 %v370, 0.0
    %v378 = vmax.f32 %v373, 0.0
    %379 = vst [vmem:[#allocation7] sm:$0xff] %v375
    %380 = vst [vmem:[#allocation7 + $0x8] sm:$0xff] %v376
    %381 = vst [vmem:[#allocation7 + $0x10] sm:$0xff] %v377
    %382 = vst [vmem:[#allocation7 + $0x18] sm:$0xff] %v378
    // Predicated region
    $region34: #{tpu_custom_call.1} parent=1 // pred_check
      _
    $region35: #{tpu_custom_call.1} parent=1 // pred_check_branch
      %384 = sbr.rel (0) target = $region37
    $region36: #{tpu_custom_call.1} parent=1 // pred_region
      %386 = vsyncadd [#allocation4], 0
      %s387 = sshll.u32 [#allocation7], 4
      %s388 = int_to_ptr.vmem [resolvable:$true] %s387
      %s389 = sshll.u32 %s6, 4
      %s390 = int_to_ptr.hbm [resolvable:$true] %s389
      %395 = dma.vmem_to_hbm [thread:$0]  %s388, 512, %s390, [#allocation4], 128, 128, 8
    $region37: #{tpu_custom_call.1} parent=1 // pred_fallthru
      _
    // Predicated region
    $region38: #{tpu_custom_call.1} parent=1 // pred_check
      _
    $region39: #{tpu_custom_call.1} parent=1 // pred_check_branch
      %397 = sbr.rel (0) target = $region41
    $region40: #{tpu_custom_call.1} parent=1 // pred_region
      %399 = dma.done [#allocation4], 512
    $region41: #{tpu_custom_call.1} parent=1 // pred_fallthru
      _
    %400 = vsyncpa [#allocation3], 1
    %401 = vsyncpa [#allocation6], 1
    %402 = vsyncpa [#allocation4], 1

</llo_original>
